<compile_context>
chip_gen: v5e
topology: v5e:2x2
jax: 0.10.0
libtpu: 0.0.40
codegen_flags: <defaults>
</compile_context>

<pallas_src>
import functools

import jax
import jax.numpy as jnp
from jax.experimental import pallas as pl
from jax.experimental.pallas import tpu as pltpu


HIDDEN = 32                 # denoiser channel width
H2 = 2 * HIDDEN             # fused tanh|sigmoid gate rows
ROWS1 = H2 + 16             # matmul #1 LHS rows (gates + folded wo row, 16-padded)
WROWS = 3 * HIDDEN          # total packed weight rows (matmul #2 rows = 16)
LANE = 128                  # TPU lane width
TN_MAX = 4096               # lane-axis tile bound (few MiB of live f32 temps)
SQRT_ABAR = 0.8             # DDIM sqrt(alpha_bar_t) for the single implicit step
SQRT_1M_ABAR = 0.6          # sqrt(1 - alpha_bar_t)
INV_SQRT_ABAR = 1.0 / SQRT_ABAR
NEG_RATIO = -(SQRT_1M_ABAR / SQRT_ABAR)   # folded into the output projection


def _pick_act_dtype():
    """bf16 transcendentals on bf16-native VPU/EUP chips (v6e/v7x); f32 otherwise."""
    try:
        kind = jax.devices()[0].device_kind.lower()
    except Exception:
        return jnp.float32
    if ("v6" in kind) or ("v7" in kind) or ("7x" in kind):
        return jnp.bfloat16
    return jnp.float32


_ACT_DTYPE = _pick_act_dtype()


def _impute_kernel(obs_ref, noisy_ref, w_ref, v_ref, o_ref, *, act_dtype):
    """Fused denoiser + implicit single-step imputation for one lane tile.

    obs_ref, noisy_ref : (1, TN) f32   observed value / noisy sample
    w_ref              : (96, H) bf16  packed matmul weights
                           rows [0,32)   = tanh-branch gate weights (wg.T)
                           rows [32,64)  = sigmoid-branch gate weights (ws.T)
                           row  64       = NEG_RATIO * wo        (rest of [64,80) zero)
                           row  80       = NEG_RATIO * (wr @ wo) (rest of [80,96) zero)
    v_ref              : (64, 8) f32   packed small vectors
                           col 0/1 = input-proj weights (obs / noisy channel)
                           col 2   = b1, col 3 = [bg|bs],
                           col 4 row 0 = NEG_RATIO * (wo.br + bo)
    o_ref              : (1, TN) f32   imputed output
    """
    h = HIDDEN
    obs = obs_ref[...]                        # (1, TN) f32
    noisy = noisy_ref[...]                    # (1, TN) f32
    W = w_ref[...]                            # (96, H) bf16
    V = v_ref[...]                            # (64, 8) f32

    w1o = V[0:h, 0:1]                         # (H, 1)
    w1n = V[0:h, 1:2]
    b1 = V[0:h, 2:3]
    bgs = V[0:H2, 3:4]                        # (2H, 1)
    bo = V[0:1, 4:5]                          # (1, 1)  NEG_RATIO*(wo.br + bo)

    # --- input conv1x1 (2 input channels) as VPU broadcast-MAC + relu ---
    x1 = jnp.maximum(w1o * obs + w1n * noisy + b1, 0.0)          # (H, TN) f32

    # --- matmul #1: fused gate pre-activations + folded NEG_RATIO*wo.x1 row ---
    m1 = jnp.dot(W[0:ROWS1, :], x1.astype(jnp.bfloat16),
                 preferred_element_type=jnp.float32)             # (80, TN) f32
    g = (m1[0:H2, :] + bgs).astype(act_dtype)                    # (2H, TN)

    # --- gate = tanh * sigmoid, with sigmoid written as tanh (1 EUP push) ---
    gate = jnp.tanh(g[0:h, :]) * (0.5 * jnp.tanh(0.5 * g[h:H2, :]) + 0.5)

    # --- matmul #2: folded NEG_RATIO*(wr@wo) projection of the gate ---
    m2 = jnp.dot(W[ROWS1:WROWS, :], gate.astype(jnp.bfloat16),
                 preferred_element_type=jnp.float32)             # (16, TN) f32

    # --- implicit (single-step) x0 prediction + observed-mask combine (f32) ---
    eps_scaled = m1[H2:H2 + 1, :] + m2[0:1, :]                   # (1, TN) = NEG_RATIO*eps
    x0 = noisy * INV_SQRT_ABAR + eps_scaled + bo
    o_ref[...] = jnp.where(obs != 0.0, obs, x0)


def _make_params(key, hidden=HIDDEN):
    ks = jax.random.split(key, 5)
    scale = 0.3
    w1 = scale * jax.random.normal(ks[0], (2, hidden), jnp.float32)
    b1 = jnp.zeros((hidden,), jnp.float32)
    wg = scale * jax.random.normal(ks[1], (hidden, hidden), jnp.float32)
    bg = jnp.zeros((hidden,), jnp.float32)
    ws = scale * jax.random.normal(ks[2], (hidden, hidden), jnp.float32)
    bs = jnp.zeros((hidden,), jnp.float32)
    wr = scale * jax.random.normal(ks[3], (hidden, hidden), jnp.float32)
    br = jnp.zeros((hidden,), jnp.float32)
    wo = scale * jax.random.normal(ks[4], (hidden,), jnp.float32)
    bo = jnp.zeros((), jnp.float32)
    return (w1, b1, wg, bg, ws, bs, wr, br, wo, bo)


def pack_params(raw):
    """Pack the 10 tiny weight/bias arrays into 2 contiguous kernel inputs,
    folding the DDIM scale and the output projection at pack time."""
    (w1, b1, wg, bg, ws, bs, wr, br, wo, bo) = raw
    h = HIDDEN
    W = jnp.zeros((WROWS, h), jnp.float32)            # (96, 32)
    W = W.at[0:h, :].set(wg.T)                        # tanh branch
    W = W.at[h:H2, :].set(ws.T)                       # sigmoid branch
    W = W.at[H2, :].set(NEG_RATIO * wo)               # folded wo on x1
    W = W.at[ROWS1, :].set(NEG_RATIO * (wr @ wo))     # folded wo@wr on gate
    V = jnp.zeros((H2, 8), jnp.float32)               # (64, 8)
    V = V.at[0:h, 0].set(w1[0, :])                    # obs-channel input weight
    V = V.at[0:h, 1].set(w1[1, :])                    # noisy-channel input weight
    V = V.at[0:h, 2].set(b1)
    V = V.at[0:H2, 3].set(jnp.concatenate([bg, bs]))
    V = V.at[0, 4].set(NEG_RATIO * (jnp.dot(br, wo) + bo))
    return W.astype(jnp.bfloat16), V


def _pick_tile(n):
    """Lane tile: big enough to amortize per-step cost, but >= 2 grid steps
    whenever there are >= 2 lane blocks so v7x's 2nd TensorCore engages."""
    n_blocks = -(-n // LANE)                          # ceil(n / LANE)
    if n_blocks >= 2:
        tn_blocks = min(TN_MAX // LANE, -(-n_blocks // 2))
    else:
        tn_blocks = 1
    tn = tn_blocks * LANE
    n_pad = -(-n // tn) * tn
    return tn, n_pad


@jax.jit
def generator_forward(observed_data, noisy_obs, W, V):
    """Equivalent of Generator.forward -> csdi.single_impute_implicit."""
    B, K, L = observed_data.shape
    n = B * K * L
    tn, n_pad = _pick_tile(n)

    obs = observed_data.reshape(1, n).astype(jnp.float32)
    noisy = noisy_obs.reshape(1, n).astype(jnp.float32)
    if n_pad != n:  # ragged tail only; tile-multiple sizes need no HBM copy
        obs = jnp.pad(obs, ((0, 0), (0, n_pad - n)))
        noisy = jnp.pad(noisy, ((0, 0), (0, n_pad - n)))

    kernel = functools.partial(_impute_kernel, act_dtype=_ACT_DTYPE)
    out = pl.pallas_call(
        kernel,
        out_shape=jax.ShapeDtypeStruct((1, n_pad), jnp.float32),
        grid_spec=pltpu.PrefetchScalarGridSpec(
            num_scalar_prefetch=0,
            grid=(n_pad // tn,),
            in_specs=[
                pl.BlockSpec((1, tn), lambda i: (0, i)),        # observed
                pl.BlockSpec((1, tn), lambda i: (0, i)),        # noisy
                pl.BlockSpec((WROWS, HIDDEN), lambda i: (0, 0)),  # packed weights
                pl.BlockSpec((H2, 8), lambda i: (0, 0)),        # packed vectors
            ],
            out_specs=pl.BlockSpec((1, tn), lambda i: (0, i)),
        ),
        compiler_params=pltpu.CompilerParams(
            dimension_semantics=("parallel",)),
    )(obs, noisy, W, V)

    return out[0, :n].reshape(B, K, L)


def _reference(observed_data, noisy_obs, raw):
    """Pure-JAX f32 reference of the same synthetic denoiser + DDIM step."""
    (w1, b1, wg, bg, ws, bs, wr, br, wo, bo) = raw
    B, K, L = observed_data.shape
    obs = observed_data.reshape(-1, 1).astype(jnp.float32)
    noisy = noisy_obs.reshape(-1, 1).astype(jnp.float32)
    x = jnp.concatenate([obs, noisy], axis=1)                   # (n, 2)
    h = jnp.maximum(x @ w1 + b1, 0.0)
    gate = jnp.tanh(h @ wg + bg) * jax.nn.sigmoid(h @ ws + bs)
    h2 = h + gate @ wr + br
    eps = h2 @ wo[:, None] + bo
    x0 = (noisy - SQRT_1M_ABAR * eps) / SQRT_ABAR
    out = jnp.where(obs != 0.0, obs, x0)
    return out[:, 0].reshape(B, K, L)


if __name__ == "__main__":
    key = jax.random.PRNGKey(0)
    k_data, k_noise, k_mask, k_params = jax.random.split(key, 4)

    # Small CSDI-style (batch, features, length) series; L=48 gives a ragged
    # tail and a 2-step lane grid (exercises padding + megacore path).
    B, K, L = 2, 4, 48
    full_data = jax.random.normal(k_data, (B, K, L), jnp.float32)
    # Simulate missingness: zeros mark unobserved entries.
    obs_mask = (jax.random.uniform(k_mask, (B, K, L)) > 0.3).astype(jnp.float32)
    observed_data = full_data * obs_mask
    noisy_obs = jax.random.normal(k_noise, (B, K, L), jnp.float32)

    raw_params = _make_params(k_params)
    W, V = pack_params(raw_params)

    out = generator_forward(observed_data, noisy_obs, W, V)
    jax.block_until_ready(out)

    assert out.shape == (B, K, L)
    assert out.dtype == jnp.float32
    # Observed entries must pass through unchanged.
    assert bool(jnp.allclose(out * obs_mask, observed_data, atol=1e-5))
    # Loose check vs f32 reference (kernel uses bf16 MXU operands and, on
    # v6e/v7x, bf16 transcendentals).
    ref = _reference(observed_data, noisy_obs, raw_params)
    assert bool(jnp.allclose(out, ref, atol=1e-1, rtol=0.0))

    print("KERNEL_OK")
</pallas_src>

<mosaic_0001>
module attributes {stable_mosaic.version = 11 : i64} {
  func.func @_impute_kernel(%arg0: i32, %arg1: memref<1x256xf32, #tpu.memory_space<vmem>>, %arg2: memref<1x256xf32, #tpu.memory_space<vmem>>, %arg3: memref<96x32xbf16, #tpu.memory_space<vmem>>, %arg4: memref<64x8xf32, #tpu.memory_space<vmem>>, %arg5: memref<1x256xf32, #tpu.memory_space<vmem>>) attributes {dimension_semantics = [#tpu.dimension_semantics<parallel>], iteration_bounds = array<i64: 2>, scalar_prefetch = 0 : i64, scratch_operands = 0 : i64, tpu.core_type = #tpu.core_type<tc>, window_params = [{transform_indices = @transform_0, window_bounds = array<i64: 1, 256>}, {transform_indices = @transform_1, window_bounds = array<i64: 1, 256>}, {pipeline_mode = #tpu.pipeline_mode<synchronous>, transform_indices = @transform_2, window_bounds = array<i64: 96, 32>}, {pipeline_mode = #tpu.pipeline_mode<synchronous>, transform_indices = @transform_3, window_bounds = array<i64: 64, 8>}, {transform_indices = @transform_4, window_bounds = array<i64: 1, 256>}]} {
    %c0 = arith.constant 0 : index
    %c0_0 = arith.constant 0 : index
    %0 = vector.load %arg1[%c0, %c0_0] : memref<1x256xf32, #tpu.memory_space<vmem>>, vector<1x256xf32>
    %c0_1 = arith.constant 0 : index
    %c0_2 = arith.constant 0 : index
    %1 = vector.load %arg2[%c0_1, %c0_2] : memref<1x256xf32, #tpu.memory_space<vmem>>, vector<1x256xf32>
    %c0_3 = arith.constant 0 : index
    %c0_4 = arith.constant 0 : index
    %2 = vector.load %arg3[%c0_3, %c0_4] : memref<96x32xbf16, #tpu.memory_space<vmem>>, vector<96x32xbf16>
    %c0_5 = arith.constant 0 : index
    %c0_6 = arith.constant 0 : index
    %3 = vector.load %arg4[%c0_5, %c0_6] : memref<64x8xf32, #tpu.memory_space<vmem>>, vector<64x8xf32>
    %4 = vector.extract_strided_slice %3 {offsets = [0, 0], sizes = [32, 1], strides = [1, 1]} : vector<64x8xf32> to vector<32x1xf32>
    %5 = vector.extract_strided_slice %3 {offsets = [0, 1], sizes = [32, 1], strides = [1, 1]} : vector<64x8xf32> to vector<32x1xf32>
    %6 = vector.extract_strided_slice %3 {offsets = [0, 2], sizes = [32, 1], strides = [1, 1]} : vector<64x8xf32> to vector<32x1xf32>
    %7 = vector.extract_strided_slice %3 {offsets = [0, 3], sizes = [64, 1], strides = [1, 1]} : vector<64x8xf32> to vector<64x1xf32>
    %8 = vector.extract_strided_slice %3 {offsets = [0, 4], sizes = [1, 1], strides = [1, 1]} : vector<64x8xf32> to vector<1x1xf32>
    %9 = vector.broadcast %4 : vector<32x1xf32> to vector<32x256xf32>
    %10 = vector.broadcast %0 : vector<1x256xf32> to vector<32x256xf32>
    %11 = arith.mulf %9, %10 : vector<32x256xf32>
    %12 = vector.broadcast %5 : vector<32x1xf32> to vector<32x256xf32>
    %13 = vector.broadcast %1 : vector<1x256xf32> to vector<32x256xf32>
    %14 = arith.mulf %12, %13 : vector<32x256xf32>
    %15 = arith.addf %11, %14 : vector<32x256xf32>
    %16 = vector.broadcast %6 : vector<32x1xf32> to vector<32x256xf32>
    %17 = arith.addf %15, %16 : vector<32x256xf32>
    %cst = arith.constant 0.000000e+00 : f32
    %18 = vector.broadcast %cst : f32 to vector<32x256xf32>
    %19 = arith.maximumf %17, %18 : vector<32x256xf32>
    %20 = vector.extract_strided_slice %2 {offsets = [0, 0], sizes = [80, 32], strides = [1, 1]} : vector<96x32xbf16> to vector<80x32xbf16>
    %21 = arith.truncf %19 : vector<32x256xf32> to vector<32x256xbf16>
    %cst_7 = arith.constant dense<0.000000e+00> : vector<80x256xf32>
    %22 = tpu.matmul %20, %21, %cst_7 {dimension_numbers = #tpu.dot_dimension_numbers<[1], [0], [0], [1], [0, 0, 1, 1], [], []>} : vector<80x32xbf16>, vector<32x256xbf16>, vector<80x256xf32> -> vector<80x256xf32>
    %23 = vector.extract_strided_slice %22 {offsets = [0, 0], sizes = [64, 256], strides = [1, 1]} : vector<80x256xf32> to vector<64x256xf32>
    %24 = vector.broadcast %7 : vector<64x1xf32> to vector<64x256xf32>
    %25 = arith.addf %23, %24 : vector<64x256xf32>
    %26 = vector.extract_strided_slice %25 {offsets = [0, 0], sizes = [32, 256], strides = [1, 1]} : vector<64x256xf32> to vector<32x256xf32>
    %27 = math.tanh %26 : vector<32x256xf32>
    %28 = vector.extract_strided_slice %25 {offsets = [32, 0], sizes = [32, 256], strides = [1, 1]} : vector<64x256xf32> to vector<32x256xf32>
    %cst_8 = arith.constant 5.000000e-01 : f32
    %29 = vector.broadcast %cst_8 : f32 to vector<32x256xf32>
    %30 = arith.mulf %29, %28 : vector<32x256xf32>
    %31 = math.tanh %30 : vector<32x256xf32>
    %cst_9 = arith.constant 5.000000e-01 : f32
    %32 = vector.broadcast %cst_9 : f32 to vector<32x256xf32>
    %33 = arith.mulf %32, %31 : vector<32x256xf32>
    %cst_10 = arith.constant 5.000000e-01 : f32
    %34 = vector.broadcast %cst_10 : f32 to vector<32x256xf32>
    %35 = arith.addf %33, %34 : vector<32x256xf32>
    %36 = arith.mulf %27, %35 : vector<32x256xf32>
    %37 = vector.extract_strided_slice %2 {offsets = [80, 0], sizes = [16, 32], strides = [1, 1]} : vector<96x32xbf16> to vector<16x32xbf16>
    %38 = arith.truncf %36 : vector<32x256xf32> to vector<32x256xbf16>
    %cst_11 = arith.constant dense<0.000000e+00> : vector<16x256xf32>
    %39 = tpu.matmul %37, %38, %cst_11 {dimension_numbers = #tpu.dot_dimension_numbers<[1], [0], [0], [1], [0, 0, 1, 1], [], []>} : vector<16x32xbf16>, vector<32x256xbf16>, vector<16x256xf32> -> vector<16x256xf32>
    %40 = vector.extract_strided_slice %22 {offsets = [64, 0], sizes = [1, 256], strides = [1, 1]} : vector<80x256xf32> to vector<1x256xf32>
    %41 = vector.extract_strided_slice %39 {offsets = [0, 0], sizes = [1, 256], strides = [1, 1]} : vector<16x256xf32> to vector<1x256xf32>
    %42 = arith.addf %40, %41 : vector<1x256xf32>
    %cst_12 = arith.constant 1.250000e+00 : f32
    %43 = vector.broadcast %cst_12 : f32 to vector<1x256xf32>
    %44 = arith.mulf %1, %43 : vector<1x256xf32>
    %45 = arith.addf %44, %42 : vector<1x256xf32>
    %46 = vector.broadcast %8 : vector<1x1xf32> to vector<1x256xf32>
    %47 = arith.addf %45, %46 : vector<1x256xf32>
    %cst_13 = arith.constant 0.000000e+00 : f32
    %48 = vector.broadcast %cst_13 : f32 to vector<1x256xf32>
    %49 = arith.cmpf one, %0, %48 : vector<1x256xf32>
    %50 = arith.select %49, %0, %47 : vector<1x256xi1>, vector<1x256xf32>
    %c0_14 = arith.constant 0 : index
    %c0_15 = arith.constant 0 : index
    %51 = vector.load %arg5[%c0_14, %c0_15] : memref<1x256xf32, #tpu.memory_space<vmem>>, vector<1x256xf32>
    tpu.vector_store %arg5[%c0_14, %c0_15], %50 {strides = array<i32>} : memref<1x256xf32, #tpu.memory_space<vmem>>, vector<1x256xf32>,
    return
  }
  func.func @transform_0(%arg0: i32) -> (i32, i32) {
    %c0_i32 = arith.constant 0 : i32
    %c0_i32_0 = arith.constant 0 : i32
    return %c0_i32, %arg0 : i32, i32
  }
  func.func @transform_1(%arg0: i32) -> (i32, i32) {
    %c0_i32 = arith.constant 0 : i32
    %c0_i32_0 = arith.constant 0 : i32
    return %c0_i32, %arg0 : i32, i32
  }
  func.func @transform_2(%arg0: i32) -> (i32, i32) {
    %c0_i32 = arith.constant 0 : i32
    %c0_i32_0 = arith.constant 0 : i32
    %c0_i32_1 = arith.constant 0 : i32
    return %c0_i32, %c0_i32_0 : i32, i32
  }
  func.func @transform_3(%arg0: i32) -> (i32, i32) {
    %c0_i32 = arith.constant 0 : i32
    %c0_i32_0 = arith.constant 0 : i32
    %c0_i32_1 = arith.constant 0 : i32
    return %c0_i32, %c0_i32_0 : i32, i32
  }
  func.func @transform_4(%arg0: i32) -> (i32, i32) {
    %c0_i32 = arith.constant 0 : i32
    %c0_i32_0 = arith.constant 0 : i32
    return %c0_i32, %arg0 : i32, i32
  }
}

</mosaic_0001>

<llo_original>
// kernel: squeeze.1
$region0: #{squeeze.1}
  %s0 = inlined_call_operand.vmem [shape: f32[384], index: 0, kind: input, shape index: {}]
  %s1 = inlined_call_operand.hbm [shape: f32[2,4,48], index: 1, kind: output, shape index: {}]
  $region1: #{squeeze.1} parent=0
    #allocation0 [shape = 'u8[4096]{0}', space=vmem, size = 0x1000, scoped, tag = 'operand span for operand 1']
    #allocation1 [shape = 's32[1]{0}', space=sflag, size = 0x4, scoped, tag = 'scoped memory for squeeze.1']
    #allocation2 [shape = 'u8[8192]{0}', space=vmem, size = 0x2000, scoped, tag = 'scoped mem for output reshape']
    #allocation3 [shape = 'u8[4096]{0}', space=vmem, size = 0x1000, scoped, tag = 'scoped mem for input reshape']
    %2 = vsyncpa [#allocation1], 0
    %s4 = ssub.s32 16, 1
    %v5 = vld [vmem:[%s0] sm:%s4]
    %6 = vst [vmem:[#allocation3] sm:%s4] %v5
    %v7 = vld [vmem:[#allocation3] sm:$0x1]
    %vm8 = vcmask 392192
    %9 = vst.msk [vmem:[#allocation2] sm:$0x1] %vm8, %v7
    %s10 = scalar_lea.vmem [#allocation3], 1
    %v11 = vld [vmem:[%s10] sm:$0x1]
    %12 = vrot.lane.b32.xlu0 %v11, 112
    %v13 = vpop.permute.xlu0 %12
    %vm14 = vcmask 392192
    %s15 = scalar_lea.vmem [#allocation2], 3
    %16 = vst.msk [vmem:[%s15] sm:$0x1] %vm14, %v13
    %s17 = scalar_lea.vmem [#allocation3], 2
    %v18 = vld [vmem:[%s17] sm:$0x1]
    %19 = vrot.lane.b32.xlu0 %v18, 96
    %v20 = vpop.permute.xlu0 %19
    %vm21 = vcmask 392192
    %s22 = scalar_lea.vmem [#allocation2], 10
    %23 = vst.msk [vmem:[%s22] sm:$0x1] %vm21, %v20
    %v24 = vld [vmem:[#allocation3] sm:$0x1]
    %25 = vrot.lane.b32.xlu0 %v24, 80
    %v26 = vpop.permute.xlu0 %25
    %vm27 = vcmask 392192
    %s28 = scalar_lea.vmem [#allocation2], 1
    %29 = vst.msk [vmem:[%s28] sm:$0x1] %vm27, %v26
    %s30 = scalar_lea.vmem [#allocation3], 1
    %v31 = vld [vmem:[%s30] sm:$0x1]
    %32 = vrot.lane.b32.xlu0 %v31, 64
    %v33 = vpop.permute.xlu0 %32
    %vm34 = vcmask 392192
    %s35 = scalar_lea.vmem [#allocation2], 8
    %36 = vst.msk [vmem:[%s35] sm:$0x1] %vm34, %v33
    %s37 = scalar_lea.vmem [#allocation3], 2
    %v38 = vld [vmem:[%s37] sm:$0x1]
    %39 = vrot.lane.b32.xlu0 %v38, 48
    %v40 = vpop.permute.xlu0 %39
    %vm41 = vcmask 392192
    %s42 = scalar_lea.vmem [#allocation2], 11
    %43 = vst.msk [vmem:[%s42] sm:$0x1] %vm41, %v40
    %v44 = vld [vmem:[#allocation3] sm:$0x1]
    %s45 = scalar_lea.vmem [#allocation3], 1
    %v46 = vld [vmem:[%s45] sm:$0x1]
    %vm47 = vcmask 785408
    %v48 = vsel %vm47, %v46, %v44
    %49 = vrot.lane.b32.xlu0 %v48, 32
    %v50 = vpop.permute.xlu0 %49
    %vm51 = vcmask 261120
    %s52 = scalar_lea.vmem [#allocation2], 2
    %53 = vst.msk [vmem:[%s52] sm:$0x1] %vm51, %v50
    %vm54 = vcmask 392448
    %s55 = scalar_lea.vmem [#allocation2], 2
    %56 = vst.msk [vmem:[%s55] sm:$0x1] %vm54, %v50
    %s57 = scalar_lea.vmem [#allocation3], 1
    %v58 = vld [vmem:[%s57] sm:$0x1]
    %s59 = scalar_lea.vmem [#allocation3], 2
    %v60 = vld [vmem:[%s59] sm:$0x1]
    %vm61 = vcmask 916480
    %v62 = vsel %vm61, %v60, %v58
    %63 = vrot.lane.b32.xlu0 %v62, 16
    %v64 = vpop.permute.xlu0 %63
    %vm65 = vcmask 130048
    %s66 = scalar_lea.vmem [#allocation2], 9
    %67 = vst.msk [vmem:[%s66] sm:$0x1] %vm65, %v64
    %vm68 = vcmask 392320
    %s69 = scalar_lea.vmem [#allocation2], 9
    %70 = vst.msk [vmem:[%s69] sm:$0x1] %vm68, %v64
    %s72 = ssub.s32 16, 1
    %v73 = vld [vmem:[#allocation2] sm:%s72]
    %s75 = ssub.s32 16, 1
    %76 = vst [vmem:[#allocation0] sm:%s75] %v73
    %s77 = scalar_lea.vmem [#allocation2], 8
    %v78 = vld [vmem:[%s77] sm:%s72]
    %s80 = ssub.s32 16, 1
    %s81 = scalar_lea.vmem [#allocation0], 4
    %82 = vst [vmem:[%s81] sm:%s80] %v78
    %84 = vsyncadd [#allocation1], 0
    %s86 = sshll.u32 [#allocation0], 4
    %s87 = int_to_ptr.vmem [resolvable:$true] %s86
    %s88 = sshll.u32 %s1, 4
    %s89 = int_to_ptr.hbm [resolvable:$true] %s88
    %91 = dma.vmem_to_hbm [thread:$0]  %s87, 128, %s89, [#allocation1]
    %93 = dma.done [#allocation1], 128
    %94 = vsyncpa [#allocation1], 1

// kernel: generator_forward.1
$region0: #{generator_forward.1}
  #allocation0 [shape = 'u32[]', space=smem, size = 0x4, offset = 0x4, fixed_abs, tag = 'smem constant byte address 0x4 - core index']
  #allocation1 [shape = 'u32[72,128]{1,0:T(1,128)}', space=vmem, size = 0x9000, scoped, tag = 'internal scratch']
  %s0 = inlined_call_operand.vmem [shape: f32[1,512], index: 0, kind: input, shape index: {}]
  %s1 = inlined_call_operand.vmem [shape: f32[1,512], index: 1, kind: input, shape index: {}]
  %s2 = inlined_call_operand.vmem [shape: bf16[96,32], index: 2, kind: input, shape index: {}]
  %s3 = inlined_call_operand.vmem [shape: f32[64,8], index: 3, kind: input, shape index: {}]
  %s4 = inlined_call_operand.vmem [shape: f32[1,512], index: 4, kind: output, shape index: {}]
  %s5 = sld [smem:[#allocation0]]
  $region49: #{generator_forward.1} parent=0
    _
  %s7 = ssub.s32 1, %s5
  %s8 = scalar_select 0, %s7, %s5
  loop: start=0, step=1, limit=4
  $region2: #{generator_forward.1} parent=0 // loop_pre_header
    _
  $region3: #{generator_forward.1} parent=0 // loop_header
    %s10 = sphi 0, %s14
    %p11 = scmp.ge.s32.totalorder %s10, 4
    %s20 = sphi 0, %s22
    %s23 = sphi 0, %s20
    %s24 = sphi 0, %s23
    %s40 = sphi 0, %s24
    %s46 = sphi 0, %s48
    %s49 = sphi 0, %s46
    %s50 = sphi 0, %s49
    %s66 = sphi 0, %s50
    %s70 = sphi 0, %s70
    %s72 = sphi 0, %s70
    %s73 = sphi 0, %s72
    %s87 = sphi 0, %s73
    %s91 = sphi 0, %s91
    %s93 = sphi 0, %s91
    %s94 = sphi 0, %s93
    %s108 = sphi 0, %s94
    %s114 = sphi 0, %s116
    %s117 = sphi 0, %s114
    %s118 = sphi 0, %s117
    %s134 = sphi 0, %s118
  $region4: #{generator_forward.1} parent=0 // loop_header_branch
    %13 = sbr.rel (%p11) target = $region8
  $region5: #{generator_forward.1} parent=0 // loop_body
    %s15 = ssub.s32 %s10, 1
    %s16 = ssub.s32 %s10, 2
    %s17 = sadd.s32 %s10, 1
    %s18 = ssub.s32 %s10, %s17
    %p19 = scmp.eq.s32.totalorder %s18, 0
    %s21 = sadd.s32 %s20, 1
    %s22 = scalar_select %p19, %s20, %s21
    %p25 = pneg %p19
    %p26 = scmp.eq.s32.totalorder %s10, 1
    %p27 = por %p25, %p26
    %p28 = scmp.ne.s32.totalorder %s20, %s23
    %p29 = scmp.eq.s32.totalorder %s10, 0
    %p30 = por %p28, %p29
    %p31 = scmp.ne.s32.totalorder %s20, %s23
    %p32 = scmp.eq.s32.totalorder %s15, 1
    %p33 = por %p31, %p32
    %p34 = scmp.ne.s32.totalorder %s23, %s24
    %p35 = scmp.eq.s32.totalorder %s15, 0
    %p36 = por %p34, %p35
    %p37 = scmp.ne.s32.totalorder %s23, %s24
    %p38 = scmp.eq.s32.totalorder %s16, 1
    %p39 = por %p37, %p38
    %p41 = scmp.ne.s32.totalorder %s24, %s40
    %p42 = scmp.eq.s32.totalorder %s16, 0
    %p43 = por %p41, %p42
    %s44 = ssub.s32 %s10, %s17
    %p45 = scmp.eq.s32.totalorder %s44, 0
    %s47 = sadd.s32 %s46, 1
    %s48 = scalar_select %p45, %s46, %s47
    %p51 = pneg %p45
    %p52 = scmp.eq.s32.totalorder %s10, 1
    %p53 = por %p51, %p52
    %p54 = scmp.ne.s32.totalorder %s46, %s49
    %p55 = scmp.eq.s32.totalorder %s10, 0
    %p56 = por %p54, %p55
    %p57 = scmp.ne.s32.totalorder %s46, %s49
    %p58 = scmp.eq.s32.totalorder %s15, 1
    %p59 = por %p57, %p58
    %p60 = scmp.ne.s32.totalorder %s49, %s50
    %p61 = scmp.eq.s32.totalorder %s15, 0
    %p62 = por %p60, %p61
    %p63 = scmp.ne.s32.totalorder %s49, %s50
    %p64 = scmp.eq.s32.totalorder %s16, 1
    %p65 = por %p63, %p64
    %p67 = scmp.ne.s32.totalorder %s50, %s66
    %p68 = scmp.eq.s32.totalorder %s16, 0
    %p69 = por %p67, %p68
    %s71 = sadd.s32 %s70, 1
    %p74 = scmp.eq.s32.totalorder %s10, 1
    %p75 = scmp.ne.s32.totalorder %s70, %s72
    %p76 = scmp.eq.s32.totalorder %s10, 0
    %p77 = por %p75, %p76
    %p78 = scmp.ne.s32.totalorder %s70, %s72
    %p79 = scmp.eq.s32.totalorder %s15, 1
    %p80 = por %p78, %p79
    %p81 = scmp.ne.s32.totalorder %s72, %s73
    %p82 = scmp.eq.s32.totalorder %s15, 0
    %p83 = por %p81, %p82
    %p84 = scmp.ne.s32.totalorder %s72, %s73
    %p85 = scmp.eq.s32.totalorder %s16, 1
    %p86 = por %p84, %p85
    %p88 = scmp.ne.s32.totalorder %s73, %s87
    %p89 = scmp.eq.s32.totalorder %s16, 0
    %p90 = por %p88, %p89
    %s92 = sadd.s32 %s91, 1
    %p95 = scmp.eq.s32.totalorder %s10, 1
    %p96 = scmp.ne.s32.totalorder %s91, %s93
    %p97 = scmp.eq.s32.totalorder %s10, 0
    %p98 = por %p96, %p97
    %p99 = scmp.ne.s32.totalorder %s91, %s93
    %p100 = scmp.eq.s32.totalorder %s15, 1
    %p101 = por %p99, %p100
    %p102 = scmp.ne.s32.totalorder %s93, %s94
    %p103 = scmp.eq.s32.totalorder %s15, 0
    %p104 = por %p102, %p103
    %p105 = scmp.ne.s32.totalorder %s93, %s94
    %p106 = scmp.eq.s32.totalorder %s16, 1
    %p107 = por %p105, %p106
    %p109 = scmp.ne.s32.totalorder %s94, %s108
    %p110 = scmp.eq.s32.totalorder %s16, 0
    %p111 = por %p109, %p110
    %s112 = ssub.s32 %s10, %s17
    %p113 = scmp.eq.s32.totalorder %s112, 0
    %s115 = sadd.s32 %s114, 1
    %s116 = scalar_select %p113, %s114, %s115
    %p119 = pneg %p113
    %p120 = scmp.eq.s32.totalorder %s10, 1
    %p121 = por %p119, %p120
    %p122 = scmp.ne.s32.totalorder %s114, %s117
    %p123 = scmp.eq.s32.totalorder %s10, 0
    %p124 = por %p122, %p123
    %p125 = scmp.ne.s32.totalorder %s114, %s117
    %p126 = scmp.eq.s32.totalorder %s15, 1
    %p127 = por %p125, %p126
    %p128 = scmp.ne.s32.totalorder %s117, %s118
    %p129 = scmp.eq.s32.totalorder %s15, 0
    %p130 = por %p128, %p129
    %p131 = scmp.ne.s32.totalorder %s117, %s118
    %p132 = scmp.eq.s32.totalorder %s16, 1
    %p133 = por %p131, %p132
    %p135 = scmp.ne.s32.totalorder %s118, %s134
    %p136 = scmp.eq.s32.totalorder %s16, 0
    %p137 = por %p135, %p136
    %p138 = scmp.le.s32.totalorder 1, %s10
    %p139 = scmp.lt.s32.totalorder %s10, 3
    %p140 = pnand %p138, %p139
    %p141 = pneg %p140
    // Predicated region
    $region9: #{generator_forward.1} parent=5 // pred_check
      _
    $region10: #{generator_forward.1} parent=5 // pred_check_branch
      %143 = sbr.rel (%p140) target = $region12
    $region11: #{generator_forward.1} parent=5 // pred_region
      %s144 = ssub.s32 %s10, 1
      // Predicated region
      $region13: #{generator_forward.1} parent=11 // pred_check
        %p145 = pneg %p83
      $region14: #{generator_forward.1} parent=11 // pred_check_branch
        %147 = sbr.rel (%p145) target = $region16
      $region15: #{generator_forward.1} parent=11 // pred_region
        _
      $region16: #{generator_forward.1} parent=11 // pred_fallthru
        _
      // Predicated region
      $region17: #{generator_forward.1} parent=11 // pred_check
        %p148 = pneg %p104
      $region18: #{generator_forward.1} parent=11 // pred_check_branch
        %150 = sbr.rel (%p148) target = $region20
      $region19: #{generator_forward.1} parent=11 // pred_region
        _
      $region20: #{generator_forward.1} parent=11 // pred_fallthru
        _
    $region12: #{generator_forward.1} parent=5 // pred_fallthru
      _
    %p151 = scmp.lt.s32.totalorder %s10, 2
    // Predicated region
    $region21: #{generator_forward.1} parent=5 // pred_check
      %p152 = pneg %p151
    $region22: #{generator_forward.1} parent=5 // pred_check_branch
      %154 = sbr.rel (%p152) target = $region24
    $region23: #{generator_forward.1} parent=5 // pred_region
      // Predicated region
      $region25: #{generator_forward.1} parent=23 // pred_check
        %p155 = pneg %p30
      $region26: #{generator_forward.1} parent=23 // pred_check_branch
        %157 = sbr.rel (%p155) target = $region28
      $region27: #{generator_forward.1} parent=23 // pred_region
        %s158 = smul.u32 2, %s10
        %p159 = scmp.lt.s32.totalorder %s158, 3
        %s160 = scalar_select %p159, %s158, 3
        %s161 = scalar_lea.vmem %s0, %s160
        %s162 = smul.u32 2, %s10
      $region28: #{generator_forward.1} parent=23 // pred_fallthru
        _
      // Predicated region
      $region29: #{generator_forward.1} parent=23 // pred_check
        %p163 = pneg %p56
      $region30: #{generator_forward.1} parent=23 // pred_check_branch
        %165 = sbr.rel (%p163) target = $region32
      $region31: #{generator_forward.1} parent=23 // pred_region
        %s166 = smul.u32 2, %s10
        %p167 = scmp.lt.s32.totalorder %s166, 3
        %s168 = scalar_select %p167, %s166, 3
        %s169 = scalar_lea.vmem %s1, %s168
        %s170 = smul.u32 2, %s10
      $region32: #{generator_forward.1} parent=23 // pred_fallthru
        _
    $region24: #{generator_forward.1} parent=5 // pred_fallthru
      _
    %p171 = scmp.le.s32.totalorder 1, %s10
    %p172 = scmp.lt.s32.totalorder %s10, 3
    %p173 = pnand %p171, %p172
    %p174 = pneg %p173
    // Predicated region
    $region33: #{generator_forward.1} parent=5 // pred_check
      _
    $region34: #{generator_forward.1} parent=5 // pred_check_branch
      %176 = sbr.rel (%p173) target = $region36
    $region35: #{generator_forward.1} parent=5 // pred_region
      %s177 = ssub.s32 %s10, 1
      %s178 = smul.u32 2, %s15
      %p179 = scmp.lt.s32.totalorder %s178, 3
      %s180 = scalar_select %p179, %s178, 3
      %s181 = scalar_lea.vmem %s0, %s180
      %p182 = pneg %p36
      %p183 = pneg %p33
      %s184 = smul.u32 2, %s15
      %p185 = scmp.lt.s32.totalorder %s184, 3
      %s186 = scalar_select %p185, %s184, 3
      %s187 = scalar_lea.vmem %s1, %s186
      %p188 = pneg %p62
      %p189 = pneg %p59
      %p190 = pneg %p83
      %p191 = pneg %p80
      %p192 = pneg %p104
      %p193 = pneg %p101
      %p194 = pneg %p130
      %p195 = pneg %p127
      %s196 = smul.u32 2, %s15
      %p197 = scmp.lt.s32.totalorder %s196, 3
      %s198 = scalar_select %p197, %s196, 3
      %s199 = scalar_lea.vmem %s4, %s198
      %s200 = smul.u32 2, %s15
      %p201 = scmp.lt.s32.totalorder %s200, 3
      %s202 = scalar_select %p201, %s200, 3
      %s203 = scalar_lea.vmem %s0, %s202
      %s204 = smul.u32 2, %s15
      %s205 = smul.u32 2, %s15
      %p206 = scmp.lt.s32.totalorder %s205, 3
      %s207 = scalar_select %p206, %s205, 3
      %s208 = scalar_lea.vmem %s1, %s207
      %s209 = smul.u32 2, %s15
      %s210 = smul.u32 2, %s15
      %p211 = scmp.lt.s32.totalorder %s210, 3
      %s212 = scalar_select %p211, %s210, 3
      %s213 = scalar_lea.vmem %s4, %s212
      %s214 = smul.u32 2, %s15
      %v216 = vld [vmem:[%s203] sm:$0x3]
      %v217 = vld [vmem:[%s208] sm:$0x3]
      %v218 = vld [vmem:[%s2] sm:$0xf]
      %v219 = vld [vmem:[%s2 + $0x4] sm:$0xf]
      %v220 = vld [vmem:[%s2 + $0x8] sm:$0xf]
      %v221 = vld [vmem:[%s2 + $0xc] sm:$0xf]
      %v222 = vld [vmem:[%s2 + $0x10] sm:$0xf]
      %v223 = vld [vmem:[%s2 + $0x14] sm:$0xf]
      %v224 = vld [vmem:[%s2 + $0x18] sm:$0xf]
      %v225 = vld [vmem:[%s2 + $0x1c] sm:$0xf]
      %v226 = vld [vmem:[%s2 + $0x20] sm:$0xf]
      %v227 = vld [vmem:[%s2 + $0x24] sm:$0xf]
      %v228 = vld [vmem:[%s2 + $0x28] sm:$0xf]
      %v229 = vld [vmem:[%s2 + $0x2c] sm:$0xf]
      %v230 = vld [vmem:[%s3] sm:$0xff]
      %v231 = vld [vmem:[%s3 + $0x8] sm:$0xff]
      %v232 = vld [vmem:[%s3 + $0x10] sm:$0xff]
      %v233 = vld [vmem:[%s3 + $0x18] sm:$0xff]
      %v234 = vld [vmem:[%s3 + $0x20] sm:$0xff]
      %v235 = vld [vmem:[%s3 + $0x28] sm:$0xff]
      %v236 = vld [vmem:[%s3 + $0x30] sm:$0xff]
      %v237 = vld [vmem:[%s3 + $0x38] sm:$0xff]
      %239 = vset.pattern.permute.xlu0 0
      %240 = vperm.xlu0 %239, %v230
      %v241 = vpop.permute.xlu0 %240
      %244 = vset.pattern.permute.xlu0 0
      %245 = vperm.xlu0 %244, %v231
      %v246 = vpop.permute.xlu0 %245
      %249 = vset.pattern.permute.xlu0 0
      %250 = vperm.xlu0 %249, %v232
      %v251 = vpop.permute.xlu0 %250
      %254 = vset.pattern.permute.xlu0 0
      %255 = vperm.xlu0 %254, %v233
      %v256 = vpop.permute.xlu0 %255
      %v259 = vperm.slane %v216, 0
      %v260 = vperm.slane %v216, 1
      %v263 = vmul.f32 %v241, %v259
      %v264 = vmul.f32 %v241, %v260
      %v265 = vmul.f32 %v246, %v259
      %v266 = vmul.f32 %v246, %v260
      %v267 = vmul.f32 %v251, %v259
      %v268 = vmul.f32 %v251, %v260
      %v269 = vmul.f32 %v256, %v259
      %v270 = vmul.f32 %v256, %v260
      %271 = vset.pattern.permute.xlu0 1
      %272 = vperm.xlu0 %271, %v230
      %v273 = vpop.permute.xlu0 %272
      %275 = vset.pattern.permute.xlu0 1
      %276 = vperm.xlu0 %275, %v231
      %v277 = vpop.permute.xlu0 %276
      %279 = vset.pattern.permute.xlu0 1
      %280 = vperm.xlu0 %279, %v232
      %v281 = vpop.permute.xlu0 %280
      %283 = vset.pattern.permute.xlu0 1
      %284 = vperm.xlu0 %283, %v233
      %v285 = vpop.permute.xlu0 %284
      %v288 = vperm.slane %v217, 0
      %v289 = vperm.slane %v217, 1
      %v292 = vmul.f32 %v273, %v288
      %v293 = vmul.f32 %v273, %v289
      %v294 = vmul.f32 %v277, %v288
      %v295 = vmul.f32 %v277, %v289
      %v296 = vmul.f32 %v281, %v288
      %v297 = vmul.f32 %v281, %v289
      %v298 = vmul.f32 %v285, %v288
      %v299 = vmul.f32 %v285, %v289
      %v300 = vadd.f32 %v263, %v292
      %v301 = vadd.f32 %v264, %v293
      %v302 = vadd.f32 %v265, %v294
      %v303 = vadd.f32 %v266, %v295
      %v304 = vadd.f32 %v267, %v296
      %v305 = vadd.f32 %v268, %v297
      %v306 = vadd.f32 %v269, %v298
      %v307 = vadd.f32 %v270, %v299
      %308 = vset.pattern.permute.xlu0 2
      %309 = vperm.xlu0 %308, %v230
      %v310 = vpop.permute.xlu0 %309
      %312 = vset.pattern.permute.xlu0 2
      %313 = vperm.xlu0 %312, %v231
      %v314 = vpop.permute.xlu0 %313
      %316 = vset.pattern.permute.xlu0 2
      %317 = vperm.xlu0 %316, %v232
      %v318 = vpop.permute.xlu0 %317
      %320 = vset.pattern.permute.xlu0 2
      %321 = vperm.xlu0 %320, %v233
      %v322 = vpop.permute.xlu0 %321
      %v324 = vadd.f32 %v300, %v310
      %v325 = vadd.f32 %v301, %v310
      %v326 = vadd.f32 %v302, %v314
      %v327 = vadd.f32 %v303, %v314
      %v328 = vadd.f32 %v304, %v318
      %v329 = vadd.f32 %v305, %v318
      %v330 = vadd.f32 %v306, %v322
      %v331 = vadd.f32 %v307, %v322
      %v332 = vmax.f32 %v324, 0.0
      %v333 = vmax.f32 %v325, 0.0
      %v334 = vmax.f32 %v326, 0.0
      %v335 = vmax.f32 %v327, 0.0
      %v336 = vmax.f32 %v328, 0.0
      %v337 = vmax.f32 %v329, 0.0
      %v338 = vmax.f32 %v330, 0.0
      %v339 = vmax.f32 %v331, 0.0
      %v340 = vpack.c.bf16 %v334, %v332
      %v341 = vpack.c.bf16 %v335, %v333
      %v342 = vpack.c.bf16 %v338, %v336
      %v343 = vpack.c.bf16 %v339, %v337
      %v354 = vunpack.c.l.b16 %v218
      %v355 = vunpack.c.l.b16 %v219
      %v356 = vunpack.c.l.b16 %v220
      %v357 = vunpack.c.l.b16 %v221
      %v358 = vunpack.c.l.b16 %v222
      %v359 = vunpack.c.l.b16 %v223
      %v360 = vunpack.c.l.b16 %v224
      %v361 = vunpack.c.l.b16 %v225
      %v362 = vunpack.c.l.b16 %v226
      %v363 = vunpack.c.l.b16 %v227
      %v364 = vpack.c.b16 %v355, %v354
      %v365 = vpack.c.b16 %v357, %v356
      %v366 = vpack.c.b16 %v359, %v358
      %v367 = vpack.c.b16 %v361, %v360
      %v368 = vpack.c.b16 %v363, %v362
      %vm369 = vcmask 261120
      %v371 = vsel %vm369, %v364, 0
      %v374 = vsel %vm369, %v365, 0
      %v377 = vsel %vm369, %v366, 0
      %v380 = vsel %vm369, %v367, 0
      %v383 = vsel %vm369, %v368, 0
      %385 = vmatpush.bf16.msra.mxu0 0
      %386 = vmatpush.bf16.msra.mxu0 0
      %387 = vmatpush.bf16.msra.mxu0 0
      %388 = vmatpush.bf16.msra.mxu0 0
      %389 = vmatpush.bf16.msra.mxu0 0
      %390 = vmatpush.bf16.msra.mxu0 0
      %391 = vmatpush.bf16.msra.mxu0 %v342
      %392 = vmatpush.bf16.msra.mxu0 %v340
      %393 = vmatmul.bf16.gmra.mxu0 %v371
      %v394 = vpop.f32.mrf.mxu0
      %v395 = vadd.f32 0.0, %v394
      %v396 = vpop.f32.mrf.mxu0
      %v397 = vadd.f32 0.0, %v396
      %398 = vmatmul.bf16.gmra.mxu0 %v374
      %v399 = vpop.f32.mrf.mxu0
      %v400 = vadd.f32 0.0, %v399
      %v401 = vpop.f32.mrf.mxu0
      %v402 = vadd.f32 0.0, %v401
      %403 = vmatmul.bf16.gmra.mxu0 %v377
      %v404 = vpop.f32.mrf.mxu0
      %v405 = vadd.f32 0.0, %v404
      %v406 = vpop.f32.mrf.mxu0
      %v407 = vadd.f32 0.0, %v406
      %408 = vmatmul.bf16.gmra.mxu0 %v380
      %v409 = vpop.f32.mrf.mxu0
      %v410 = vadd.f32 0.0, %v409
      %v411 = vpop.f32.mrf.mxu0
      %v412 = vadd.f32 0.0, %v411
      %413 = vmatmul.bf16.gmra.mxu0 %v383
      %v414 = vpop.f32.mrf.mxu0
      %v415 = vadd.f32 0.0, %v414
      %v416 = vpop.f32.mrf.mxu0
      %417 = vdwg.mxu0
      %418 = vmatpush.bf16.msra.mxu0 0
      %419 = vmatpush.bf16.msra.mxu0 0
      %420 = vmatpush.bf16.msra.mxu0 0
      %421 = vmatpush.bf16.msra.mxu0 0
      %422 = vmatpush.bf16.msra.mxu0 0
      %423 = vmatpush.bf16.msra.mxu0 0
      %424 = vmatpush.bf16.msra.mxu0 %v343
      %425 = vmatpush.bf16.msra.mxu0 %v341
      %426 = vmatmul.bf16.gmra.mxu0 %v371
      %v427 = vpop.f32.mrf.mxu0
      %v428 = vadd.f32 0.0, %v427
      %v429 = vpop.f32.mrf.mxu0
      %v430 = vadd.f32 0.0, %v429
      %431 = vmatmul.bf16.gmra.mxu0 %v374
      %v432 = vpop.f32.mrf.mxu0
      %v433 = vadd.f32 0.0, %v432
      %v434 = vpop.f32.mrf.mxu0
      %v435 = vadd.f32 0.0, %v434
      %436 = vmatmul.bf16.gmra.mxu0 %v377
      %v437 = vpop.f32.mrf.mxu0
      %v438 = vadd.f32 0.0, %v437
      %v439 = vpop.f32.mrf.mxu0
      %v440 = vadd.f32 0.0, %v439
      %441 = vmatmul.bf16.gmra.mxu0 %v380
      %v442 = vpop.f32.mrf.mxu0
      %v443 = vadd.f32 0.0, %v442
      %v444 = vpop.f32.mrf.mxu0
      %v445 = vadd.f32 0.0, %v444
      %446 = vmatmul.bf16.gmra.mxu0 %v383
      %v447 = vpop.f32.mrf.mxu0
      %v448 = vadd.f32 0.0, %v447
      %v449 = vpop.f32.mrf.mxu0
      %450 = vdwg.mxu0
      %451 = vset.pattern.permute.xlu0 3
      %452 = vperm.xlu0 %451, %v230
      %v453 = vpop.permute.xlu0 %452
      %455 = vset.pattern.permute.xlu0 3
      %456 = vperm.xlu0 %455, %v231
      %v457 = vpop.permute.xlu0 %456
      %459 = vset.pattern.permute.xlu0 3
      %460 = vperm.xlu0 %459, %v232
      %v461 = vpop.permute.xlu0 %460
      %463 = vset.pattern.permute.xlu0 3
      %464 = vperm.xlu0 %463, %v233
      %v465 = vpop.permute.xlu0 %464
      %468 = vset.pattern.permute.xlu0 3
      %469 = vperm.xlu0 %468, %v234
      %v470 = vpop.permute.xlu0 %469
      %473 = vset.pattern.permute.xlu0 3
      %474 = vperm.xlu0 %473, %v235
      %v475 = vpop.permute.xlu0 %474
      %478 = vset.pattern.permute.xlu0 3
      %479 = vperm.xlu0 %478, %v236
      %v480 = vpop.permute.xlu0 %479
      %483 = vset.pattern.permute.xlu0 3
      %484 = vperm.xlu0 %483, %v237
      %v485 = vpop.permute.xlu0 %484
      %v487 = vadd.f32 %v395, %v453
      %v488 = vadd.f32 %v428, %v453
      %v489 = vadd.f32 %v397, %v457
      %v490 = vadd.f32 %v430, %v457
      %v491 = vadd.f32 %v400, %v461
      %v492 = vadd.f32 %v433, %v461
      %v493 = vadd.f32 %v402, %v465
      %v494 = vadd.f32 %v435, %v465
      %v495 = vadd.f32 %v405, %v470
      %v496 = vadd.f32 %v438, %v470
      %v497 = vadd.f32 %v407, %v475
      %v498 = vadd.f32 %v440, %v475
      %v499 = vadd.f32 %v410, %v480
      %v500 = vadd.f32 %v443, %v480
      %v501 = vadd.f32 %v412, %v485
      %v502 = vadd.f32 %v445, %v485
      %v503 = vtanh.pop %v487
      %v504 = vtanh.pop %v488
      %v505 = vtanh.pop %v489
      %v506 = vtanh.pop %v490
      %v507 = vtanh.pop %v491
      %v508 = vtanh.pop %v492
      %v509 = vtanh.pop %v493
      %v510 = vtanh.pop %v494
      %v511 = vmul.f32 %v495, 0.5
      %v512 = vmul.f32 %v496, 0.5
      %v513 = vmul.f32 %v497, 0.5
      %v514 = vmul.f32 %v498, 0.5
      %v515 = vmul.f32 %v499, 0.5
      %v516 = vmul.f32 %v500, 0.5
      %v517 = vmul.f32 %v501, 0.5
      %v518 = vmul.f32 %v502, 0.5
      %v519 = vtanh.pop %v511
      %v520 = vtanh.pop %v512
      %v521 = vtanh.pop %v513
      %v522 = vtanh.pop %v514
      %v523 = vtanh.pop %v515
      %v524 = vtanh.pop %v516
      %v525 = vtanh.pop %v517
      %v526 = vtanh.pop %v518
      %v527 = vmul.f32 %v519, 0.5
      %v528 = vmul.f32 %v520, 0.5
      %v529 = vmul.f32 %v521, 0.5
      %v530 = vmul.f32 %v522, 0.5
      %v531 = vmul.f32 %v523, 0.5
      %v532 = vmul.f32 %v524, 0.5
      %v533 = vmul.f32 %v525, 0.5
      %v534 = vmul.f32 %v526, 0.5
      %v535 = vadd.f32 %v527, 0.5
      %v536 = vadd.f32 %v528, 0.5
      %v537 = vadd.f32 %v529, 0.5
      %v538 = vadd.f32 %v530, 0.5
      %v539 = vadd.f32 %v531, 0.5
      %v540 = vadd.f32 %v532, 0.5
      %v541 = vadd.f32 %v533, 0.5
      %v542 = vadd.f32 %v534, 0.5
      %v543 = vmul.f32 %v503, %v535
      %v544 = vmul.f32 %v504, %v536
      %v545 = vmul.f32 %v505, %v537
      %v546 = vmul.f32 %v506, %v538
      %v547 = vmul.f32 %v507, %v539
      %v548 = vmul.f32 %v508, %v540
      %v549 = vmul.f32 %v509, %v541
      %v550 = vmul.f32 %v510, %v542
      %v551 = vpack.c.bf16 %v545, %v543
      %v552 = vpack.c.bf16 %v546, %v544
      %v553 = vpack.c.bf16 %v549, %v547
      %v554 = vpack.c.bf16 %v550, %v548
      %v557 = vunpack.c.l.b16 %v228
      %v558 = vunpack.c.l.b16 %v229
      %v559 = vpack.c.b16 %v558, %v557
      %v561 = vsel %vm369, %v559, 0
      %563 = vmatpush.bf16.msra.mxu0 0
      %564 = vmatpush.bf16.msra.mxu0 0
      %565 = vmatpush.bf16.msra.mxu0 0
      %566 = vmatpush.bf16.msra.mxu0 0
      %567 = vmatpush.bf16.msra.mxu0 0
      %568 = vmatpush.bf16.msra.mxu0 0
      %569 = vmatpush.bf16.msra.mxu0 %v553
      %570 = vmatpush.bf16.msra.mxu0 %v551
      %571 = vmatmul.bf16.gmra.mxu0 %v561
      %v572 = vpop.f32.mrf.mxu0
      %v573 = vadd.f32 0.0, %v572
      %v574 = vpop.f32.mrf.mxu0
      %575 = vdwg.mxu0
      %576 = vmatpush.bf16.msra.mxu0 0
      %577 = vmatpush.bf16.msra.mxu0 0
      %578 = vmatpush.bf16.msra.mxu0 0
      %579 = vmatpush.bf16.msra.mxu0 0
      %580 = vmatpush.bf16.msra.mxu0 0
      %581 = vmatpush.bf16.msra.mxu0 0
      %582 = vmatpush.bf16.msra.mxu0 %v554
      %583 = vmatpush.bf16.msra.mxu0 %v552
      %584 = vmatmul.bf16.gmra.mxu0 %v561
      %v585 = vpop.f32.mrf.mxu0
      %v586 = vadd.f32 0.0, %v585
      %v587 = vpop.f32.mrf.mxu0
      %588 = vdwg.mxu0
      %v589 = vadd.f32 %v415, %v573
      %v590 = vadd.f32 %v448, %v586
      %v591 = vmul.f32 %v217, 1.25
      %v594 = vrot.slane %v590, 7
      %vm595 = vcmask 1040384
      %v596 = vsel %vm595, %v589, %v594
      %v598 = vadd.f32 %v591, %v596
      %599 = vset.pattern.permute.xlu0 4
      %600 = vperm.xlu0 %599, %v230
      %v601 = vpop.permute.xlu0 %600
      %v602 = vperm.slane %v601, 0
      %v604 = vadd.f32 %v598, %v602
      %vm605 = vcmp.ne.f32.partialorder %v216, 0.0
      %v606 = vsel %vm605, %v216, %v604
      %v607 = vlaneseq
      %vm608 = vcmp.ge.s32.totalorder %v607, 0
      %vm609 = vcmp.lt.s32.totalorder %v607, 256
      %vm610 = vmand %vm608, %vm609
      %611 = vst.msk [vmem:[%s213] sm:$0x3] %vm610, %v606
      %s612 = smul.u32 2, %s15
      %p613 = scmp.lt.s32.totalorder %s612, 3
      %s614 = scalar_select %p613, %s612, 3
      %s615 = scalar_lea.vmem %s4, %s614
      // Predicated region
      $region37: #{generator_forward.1} parent=35 // pred_check
        %p616 = pneg %p127
      $region38: #{generator_forward.1} parent=35 // pred_check_branch
        %618 = sbr.rel (%p616) target = $region40
      $region39: #{generator_forward.1} parent=35 // pred_region
        %s619 = smul.u32 2, %s15
      $region40: #{generator_forward.1} parent=35 // pred_fallthru
        _
    $region36: #{generator_forward.1} parent=5 // pred_fallthru
      _
    %p620 = scmp.le.s32.totalorder 2, %s10
    // Predicated region
    $region41: #{generator_forward.1} parent=5 // pred_check
      %p621 = pneg %p620
    $region42: #{generator_forward.1} parent=5 // pred_check_branch
      %623 = sbr.rel (%p621) target = $region44
    $region43: #{generator_forward.1} parent=5 // pred_region
      %s624 = ssub.s32 %s10, 2
      // Predicated region
      $region45: #{generator_forward.1} parent=43 // pred_check
        %p625 = pneg %p133
      $region46: #{generator_forward.1} parent=43 // pred_check_branch
        %627 = sbr.rel (%p625) target = $region48
      $region47: #{generator_forward.1} parent=43 // pred_region
        %s628 = smul.u32 2, %s16
        %p629 = scmp.lt.s32.totalorder %s628, 3
        %s630 = scalar_select %p629, %s628, 3
        %s631 = scalar_lea.vmem %s4, %s630
      $region48: #{generator_forward.1} parent=43 // pred_fallthru
        _
    $region44: #{generator_forward.1} parent=5 // pred_fallthru
      _
  $region6: #{generator_forward.1} parent=0 // loop_footer
    %s14 = sadd.s32 1, %s10
  $region7: #{generator_forward.1} parent=0 // loop_footer_branch
    %9 = sbr.rel target = $region3
  $region8: #{generator_forward.1} parent=0 // loop_exit
    _

</llo_original>
